<compile_context>
chip_gen: v6e
topology: v6e:2x2x1
jax: 0.10.0
libtpu: 0.0.40
codegen_flags: <defaults>
</compile_context>

<pallas_src>
import functools

import jax
import jax.numpy as jnp
from jax import lax
from jax.experimental import pallas as pl
from jax.experimental.pallas import tpu as pltpu


def _sep_conv_block_kernel(x_ref, xtop_ref, xbot_ref, wd_ref, wp_ref,
                           bn_shift_ref, o_ref, xs_ref, *, use_relu: bool):
    """One (batch, row-tile) per grid step.  NHWC in-kernel (channels on lanes).

    x_ref      : (1, TH, W, Cin)   current row tile
    xtop_ref   : (1, 1,  W, Cin)   row just above the tile (clamped; masked at t==0)
    xbot_ref   : (1, 1,  W, Cin)   row just below the tile (clamped; masked at t==T-1)
    wd_ref     : (3, 3, Cin)       depthwise 3x3 weights (f32)
    wp_ref     : (Cout, Cin)       pointwise weights, BN scale folded, MXU dtype
    bn_shift_ref: (Cout, 1)        folded BN shift (beta - mean * scale)
    o_ref      : (1, Cout, TH*W)   channels-major, lane-dense output tile
    xs_ref     : ((TH+2)*W + 2, Cin) f32 VMEM staging buffer for the +-1 shifts
    """
    th, w, cin = x_ref.shape[1], x_ref.shape[2], x_ref.shape[3]
    f32 = jnp.float32
    t = pl.program_id(1)
    nt = pl.num_programs(1)
    n_rows = th * w            # flattened rows of one output tile
    n_ext = (th + 2) * w       # flattened rows including the two halo rows

    # ---- assemble the flattened, halo-extended input band ------------------
    top_ok = (t > 0).astype(f32)          # conv zero-pad above the image
    bot_ok = (t < nt - 1).astype(f32)     # conv zero-pad below the image
    top = xtop_ref[0, 0].astype(f32) * top_ok            # (W, Cin)
    bot = xbot_ref[0, 0].astype(f32) * bot_ok            # (W, Cin)
    cur = x_ref[0].astype(f32).reshape(n_rows, cin)      # (TH*W, Cin)
    # Tile-aligned concat along sublanes (pieces are multiples of 8 when W%8==0).
    xf = jnp.concatenate([top, cur, bot], axis=0)        # ((TH+2)*W, Cin)

    # ---- +-1 column shifts via ONE staging buffer --------------------------
    # xs[1 + q] = xf[q]; rows 0 and n_ext+1 are zero guards.  This yields both
    # shifted views with 2 relayout copies total instead of 6 unaligned
    # window slices of a padded buffer.
    zrow = jnp.zeros((1, cin), f32)
    xs_ref[0:1, :] = zrow
    xs_ref[n_ext + 1:n_ext + 2, :] = zrow
    xs_ref[1:n_ext + 1, :] = xf
    x_m1 = xs_ref[0:n_ext, :]            # value at flat index q-1  (w-1 taps)
    x_p1 = xs_ref[2:n_ext + 2, :]        # value at flat index q+1  (w+1 taps)

    # The flattened +-1 shifts wrap across image rows exactly at w==0 / w==W-1,
    # which is where the conv's zero padding lives -> mask those columns.
    col = lax.broadcasted_iota(jnp.int32, (th, w, 1), 1).reshape(n_rows, 1)
    mask_l = (col >= 1).astype(f32)
    mask_r = (col <= w - 2).astype(f32)

    # ---- depthwise 3x3 on the VPU (f32 accumulation; v5e has no bf16 VPU) ---
    acc = jnp.zeros((n_rows, cin), f32)
    for kh in range(3):
        lo = kh * w                       # aligned sublane offset (W % 8 == 0)
        hi = lo + n_rows
        acc = acc + xf[lo:hi] * wd_ref[kh, 1, :]
        acc = acc + (x_m1[lo:hi] * mask_l) * wd_ref[kh, 0, :]
        acc = acc + (x_p1[lo:hi] * mask_r) * wd_ref[kh, 2, :]

    # ---- pointwise 1x1 on the MXU (bf16 in, f32 accumulate) -----------------
    # (Cout, Cin) x (TH*W, Cin)^T -> (Cout, TH*W): channels-major result, so
    # the store below is lane-dense and the wrapper needs no output transpose.
    y = lax.dot_general(
        wp_ref[...], acc.astype(wp_ref.dtype),
        dimension_numbers=(((1,), (1,)), ((), ())),
        preferred_element_type=f32)                       # (Cout, TH*W)

    y = y + bn_shift_ref[...]                             # folded BN shift
    if use_relu:
        y = jnp.maximum(y, 0.0)
    o_ref[0] = y.astype(o_ref.dtype)


def _choose_row_tile(H, W, Cin, Cout, budget_bytes=4 << 20):
    """Largest row tile that (a) divides H, (b) keeps the output block
    lane-dense (tile_h*W % 128 == 0, or the full image), and (c) keeps the
    per-step working set within a small VMEM budget that is safe on the
    default scoped limits of v5e / v6e / v7x."""
    valid = [th for th in range(1, H + 1)
             if H % th == 0 and (th == H or (th * W) % 128 == 0)]

    def per_step_bytes(th):
        elems = (2 * th * W * Cin       # input tile (double-buffered)
                 + 4 * W * Cin          # halo rows (double-buffered)
                 + 2 * (th + 2) * W * Cin   # f32 accumulator + staging buffer
                 + 2 * th * W * Cout)   # output tile (double-buffered)
        return elems * 4

    fitting = [th for th in valid if per_step_bytes(th) <= budget_bytes]
    return max(fitting) if fitting else min(valid)


def seperable_conv_block(x_nchw, w_dw, w_pw, gamma, beta, running_mean,
                         running_var, *, eps=1e-5, use_relu=True,
                         tile_h=None, mxu_dtype=jnp.bfloat16):
    """x_nchw: (N, Cin, H, W) float32.  Returns (N, Cout, H, W)."""
    N, Cin, H, W = x_nchw.shape
    Cout = w_pw.shape[0]

    if tile_h is None:
        tile_h = _choose_row_tile(H, W, Cin, Cout)
    if H % tile_h != 0:
        # TODO(synk): ragged last row tile is not handled.
        raise ValueError(f"tile_h={tile_h} must divide H={H}")
    if tile_h != H and (tile_h * W) % 128 != 0:
        # TODO(synk): masked / padded stores for non lane-aligned output tiles.
        raise ValueError("tile_h*W must be a multiple of 128 (or tile_h == H)")
    T = H // tile_h

    # NCHW -> NHWC (channels on the lane axis) for the kernel input.
    # TODO(synk): keep activations NHWC end-to-end in the surrounding model to
    # drop this input relayout; the kernel output is already NCHW-layout.
    x = jnp.transpose(x_nchw, (0, 2, 3, 1))

    # PyTorch depthwise weight (Cin, 1, 3, 3) -> (3, 3, Cin), f32 for the VPU.
    wd = jnp.transpose(w_dw[:, 0, :, :], (1, 2, 0)).astype(jnp.float32)
    # Fold the BN scale into the pointwise weights; only "+ shift" stays in
    # the kernel epilogue.  (Cout, Cin), cast to the MXU dtype (bf16 default).
    inv_std = gamma / jnp.sqrt(running_var + eps)
    wp_t = (w_pw[:, :, 0, 0] * inv_std[:, None]).astype(mxu_dtype)
    shift = (beta - running_mean * inv_std).astype(jnp.float32).reshape(Cout, 1)

    out_flat = pl.pallas_call(
        functools.partial(_sep_conv_block_kernel, use_relu=use_relu),
        out_shape=jax.ShapeDtypeStruct((N, Cout, H * W), x_nchw.dtype),
        grid_spec=pltpu.PrefetchScalarGridSpec(
            num_scalar_prefetch=0,
            grid=(N, T),
            in_specs=[
                # current row tile
                pl.BlockSpec((1, tile_h, W, Cin),
                             lambda n, t: (n, t, 0, 0)),
                # row above the tile (clamped; masked in-kernel at t == 0)
                pl.BlockSpec((1, 1, W, Cin),
                             lambda n, t: (n, jnp.maximum(t * tile_h - 1, 0), 0, 0)),
                # row below the tile (clamped; masked in-kernel at t == T-1)
                pl.BlockSpec((1, 1, W, Cin),
                             lambda n, t: (n, jnp.minimum(t * tile_h + tile_h, H - 1), 0, 0)),
                pl.BlockSpec((3, 3, Cin), lambda n, t: (0, 0, 0)),
                pl.BlockSpec((Cout, Cin), lambda n, t: (0, 0)),
                pl.BlockSpec((Cout, 1), lambda n, t: (0, 0)),
            ],
            out_specs=pl.BlockSpec((1, Cout, tile_h * W),
                                   lambda n, t: (n, 0, t)),
            scratch_shapes=[
                pltpu.VMEM(((tile_h + 2) * W + 2, Cin), jnp.float32),
            ],
        ),
        compiler_params=pltpu.CompilerParams(
            dimension_semantics=("parallel", "parallel")),
    )(x, x, x, wd, wp_t, shift)

    # (N, Cout, H*W) -> (N, Cout, H, W): pure reshape, no transpose needed.
    return out_flat.reshape(N, Cout, H, W)


def _reference(x_nchw, w_dw, w_pw, gamma, beta, running_mean, running_var,
               *, eps=1e-5, use_relu=True):
    """Pure-JAX reference (lax convs) mirroring the PyTorch module."""
    Cin = x_nchw.shape[1]
    dw = lax.conv_general_dilated(
        x_nchw, w_dw, window_strides=(1, 1), padding=((1, 1), (1, 1)),
        dimension_numbers=("NCHW", "OIHW", "NCHW"), feature_group_count=Cin)
    pw = lax.conv_general_dilated(
        dw, w_pw, window_strides=(1, 1), padding="VALID",
        dimension_numbers=("NCHW", "OIHW", "NCHW"))
    scale = (gamma / jnp.sqrt(running_var + eps))[None, :, None, None]
    shift = (beta - running_mean * gamma / jnp.sqrt(running_var + eps))[None, :, None, None]
    y = pw * scale + shift
    return jnp.maximum(y, 0.0) if use_relu else y


if __name__ == "__main__":
    key = jax.random.PRNGKey(0)
    k1, k2, k3, k4, k5, k6, k7 = jax.random.split(key, 7)

    N, Cin, Cout, H, W = 2, 4, 8, 16, 16

    x = jax.random.normal(k1, (N, Cin, H, W), jnp.float32)
    # Conv2d(in, in, 3, groups=in, bias=False): weight (Cin, 1, 3, 3)
    w_dw = 0.3 * jax.random.normal(k2, (Cin, 1, 3, 3), jnp.float32)
    # Conv2d(in, out, 1, bias=False): weight (Cout, Cin, 1, 1)
    w_pw = 0.3 * jax.random.normal(k3, (Cout, Cin, 1, 1), jnp.float32)
    # BatchNorm2d(out) parameters / running stats (eval mode)
    gamma = 1.0 + 0.1 * jax.random.normal(k4, (Cout,), jnp.float32)
    beta = 0.1 * jax.random.normal(k5, (Cout,), jnp.float32)
    running_mean = 0.1 * jax.random.normal(k6, (Cout,), jnp.float32)
    running_var = jnp.abs(jax.random.normal(k7, (Cout,), jnp.float32)) + 0.5

    ref = _reference(x, w_dw, w_pw, gamma, beta, running_mean, running_var,
                     use_relu=True)

    # f32 MXU path (tight check of the kernel structure / halo handling);
    # tile_h=8 -> grid=(2, 2), so both halo-exchange paths are exercised.
    out_f32 = seperable_conv_block(
        x, w_dw, w_pw, gamma, beta, running_mean, running_var,
        use_relu=True, tile_h=8, mxu_dtype=jnp.float32)
    out_f32 = jax.block_until_ready(out_f32)
    assert out_f32.shape == (N, Cout, H, W)
    assert jnp.allclose(out_f32, ref, atol=1e-4, rtol=1e-4), "f32 mismatch vs reference"

    # Default perf configuration: bf16-fed MXU with f32 accumulation
    # (wider tolerance because the pointwise weights/activations are bf16).
    out_bf16 = seperable_conv_block(
        x, w_dw, w_pw, gamma, beta, running_mean, running_var,
        use_relu=True, tile_h=8)
    out_bf16 = jax.block_until_ready(out_bf16)
    assert out_bf16.shape == (N, Cout, H, W)
    assert jnp.allclose(out_bf16, ref, atol=3e-2, rtol=3e-2), "bf16 mismatch vs reference"

    print("KERNEL_OK")
</pallas_src>

<mosaic_0001>
module attributes {stable_mosaic.version = 11 : i64} {
  func.func @_sep_conv_block_kernel(%arg0: i32, %arg1: i32, %arg2: memref<1x8x16x4xf32, #tpu.memory_space<vmem>>, %arg3: memref<1x1x16x4xf32, #tpu.memory_space<vmem>>, %arg4: memref<1x1x16x4xf32, #tpu.memory_space<vmem>>, %arg5: memref<3x3x4xf32, #tpu.memory_space<vmem>>, %arg6: memref<8x4xf32, #tpu.memory_space<vmem>>, %arg7: memref<8x1xf32, #tpu.memory_space<vmem>>, %arg8: memref<1x8x128xf32, #tpu.memory_space<vmem>>, %arg9: memref<162x4xf32, #tpu.memory_space<vmem>>) attributes {dimension_semantics = [#tpu.dimension_semantics<parallel>, #tpu.dimension_semantics<parallel>], iteration_bounds = array<i64: 2, 2>, scalar_prefetch = 0 : i64, scratch_operands = 1 : i64, tpu.core_type = #tpu.core_type<tc>, window_params = [{transform_indices = @transform_0, window_bounds = array<i64: 1, 8, 16, 4>}, {transform_indices = @transform_1, window_bounds = array<i64: 1, 1, 16, 4>}, {transform_indices = @transform_2, window_bounds = array<i64: 1, 1, 16, 4>}, {pipeline_mode = #tpu.pipeline_mode<synchronous>, transform_indices = @transform_3, window_bounds = array<i64: 3, 3, 4>}, {pipeline_mode = #tpu.pipeline_mode<synchronous>, transform_indices = @transform_4, window_bounds = array<i64: 8, 4>}, {pipeline_mode = #tpu.pipeline_mode<synchronous>, transform_indices = @transform_5, window_bounds = array<i64: 8, 1>}, {transform_indices = @transform_6, window_bounds = array<i64: 1, 8, 128>}]} {
    %c0_i32 = arith.constant 0 : i32
    %0 = arith.cmpi sgt, %arg1, %c0_i32 : i32
    %1 = arith.extui %0 : i1 to i32
    %2 = arith.sitofp %1 : i32 to f32
    %c1_i32 = arith.constant 1 : i32
    %3 = arith.cmpi slt, %arg1, %c1_i32 : i32
    %4 = arith.extui %3 : i1 to i32
    %5 = arith.sitofp %4 : i32 to f32
    %c0 = arith.constant 0 : index
    %c0_0 = arith.constant 0 : index
    %c0_1 = arith.constant 0 : index
    %c0_2 = arith.constant 0 : index
    %6 = vector.load %arg3[%c0, %c0_0, %c0_1, %c0_2] : memref<1x1x16x4xf32, #tpu.memory_space<vmem>>, vector<1x1x16x4xf32>
    %7 = vector.shape_cast %6 : vector<1x1x16x4xf32> to vector<16x4xf32>
    %8 = vector.broadcast %2 : f32 to vector<16x4xf32>
    %9 = arith.mulf %7, %8 : vector<16x4xf32>
    %c0_3 = arith.constant 0 : index
    %c0_4 = arith.constant 0 : index
    %c0_5 = arith.constant 0 : index
    %c0_6 = arith.constant 0 : index
    %10 = vector.load %arg4[%c0_3, %c0_4, %c0_5, %c0_6] : memref<1x1x16x4xf32, #tpu.memory_space<vmem>>, vector<1x1x16x4xf32>
    %11 = vector.shape_cast %10 : vector<1x1x16x4xf32> to vector<16x4xf32>
    %12 = vector.broadcast %5 : f32 to vector<16x4xf32>
    %13 = arith.mulf %11, %12 : vector<16x4xf32>
    %c0_7 = arith.constant 0 : index
    %c0_8 = arith.constant 0 : index
    %c0_9 = arith.constant 0 : index
    %c0_10 = arith.constant 0 : index
    %14 = vector.load %arg2[%c0_7, %c0_8, %c0_9, %c0_10] : memref<1x8x16x4xf32, #tpu.memory_space<vmem>>, vector<1x8x16x4xf32>
    %15 = vector.shape_cast %14 : vector<1x8x16x4xf32> to vector<8x16x4xf32>
    %16 = vector.shape_cast %15 : vector<8x16x4xf32> to vector<128x4xf32>
    %17 = tpu.concatenate %9, %16, %13 in 0 : vector<16x4xf32>, vector<128x4xf32>, vector<16x4xf32> -> vector<160x4xf32>
    %cst = arith.constant 0.000000e+00 : f32
    %18 = vector.broadcast %cst : f32 to vector<1x4xf32>
    %c0_11 = arith.constant 0 : index
    %c0_12 = arith.constant 0 : index
    %19 = vector.load %arg9[%c0_11, %c0_12] : memref<162x4xf32, #tpu.memory_space<vmem>>, vector<1x4xf32>
    tpu.vector_store %arg9[%c0_11, %c0_12], %18 {strides = array<i32>} : memref<162x4xf32, #tpu.memory_space<vmem>>, vector<1x4xf32>,
    %c161 = arith.constant 161 : index
    %c0_13 = arith.constant 0 : index
    %20 = vector.load %arg9[%c161, %c0_13] : memref<162x4xf32, #tpu.memory_space<vmem>>, vector<1x4xf32>
    tpu.vector_store %arg9[%c161, %c0_13], %18 {strides = array<i32>} : memref<162x4xf32, #tpu.memory_space<vmem>>, vector<1x4xf32>,
    %c1 = arith.constant 1 : index
    %c0_14 = arith.constant 0 : index
    %21 = vector.load %arg9[%c1, %c0_14] : memref<162x4xf32, #tpu.memory_space<vmem>>, vector<160x4xf32>
    tpu.vector_store %arg9[%c1, %c0_14], %17 {strides = array<i32>} : memref<162x4xf32, #tpu.memory_space<vmem>>, vector<160x4xf32>,
    %c0_15 = arith.constant 0 : index
    %c0_16 = arith.constant 0 : index
    %22 = vector.load %arg9[%c0_15, %c0_16] : memref<162x4xf32, #tpu.memory_space<vmem>>, vector<160x4xf32>
    %c2 = arith.constant 2 : index
    %c0_17 = arith.constant 0 : index
    %23 = vector.load %arg9[%c2, %c0_17] : memref<162x4xf32, #tpu.memory_space<vmem>>, vector<160x4xf32>
    %24 = tpu.iota {dimensions = array<i32: 1>} : vector<8x16x1xi32>
    %25 = vector.shape_cast %24 : vector<8x16x1xi32> to vector<128x1xi32>
    %c1_i32_18 = arith.constant 1 : i32
    %26 = vector.broadcast %c1_i32_18 : i32 to vector<128x1xi32>
    %27 = arith.cmpi sge, %25, %26 : vector<128x1xi32>
    %28 = arith.extui %27 : vector<128x1xi1> to vector<128x1xi32>
    %29 = arith.sitofp %28 : vector<128x1xi32> to vector<128x1xf32>
    %c14_i32 = arith.constant 14 : i32
    %30 = vector.broadcast %c14_i32 : i32 to vector<128x1xi32>
    %31 = arith.cmpi sle, %25, %30 : vector<128x1xi32>
    %32 = arith.extui %31 : vector<128x1xi1> to vector<128x1xi32>
    %33 = arith.sitofp %32 : vector<128x1xi32> to vector<128x1xf32>
    %cst_19 = arith.constant 0.000000e+00 : f32
    %34 = vector.broadcast %cst_19 : f32 to vector<128x4xf32>
    %35 = vector.extract_strided_slice %17 {offsets = [0, 0], sizes = [128, 4], strides = [1, 1]} : vector<160x4xf32> to vector<128x4xf32>
    %c0_20 = arith.constant 0 : index
    %c1_21 = arith.constant 1 : index
    %c0_22 = arith.constant 0 : index
    %36 = vector.load %arg5[%c0_20, %c1_21, %c0_22] : memref<3x3x4xf32, #tpu.memory_space<vmem>>, vector<1x1x4xf32>
    %37 = vector.shape_cast %36 : vector<1x1x4xf32> to vector<4xf32>
    %38 = vector.shape_cast %37 : vector<4xf32> to vector<1x4xf32>
    %39 = vector.broadcast %38 : vector<1x4xf32> to vector<128x4xf32>
    %40 = arith.mulf %35, %39 : vector<128x4xf32>
    %41 = arith.addf %34, %40 : vector<128x4xf32>
    %42 = vector.extract_strided_slice %22 {offsets = [0, 0], sizes = [128, 4], strides = [1, 1]} : vector<160x4xf32> to vector<128x4xf32>
    %43 = vector.broadcast %29 : vector<128x1xf32> to vector<128x4xf32>
    %44 = arith.mulf %42, %43 : vector<128x4xf32>
    %c0_23 = arith.constant 0 : index
    %c0_24 = arith.constant 0 : index
    %c0_25 = arith.constant 0 : index
    %45 = vector.load %arg5[%c0_23, %c0_24, %c0_25] : memref<3x3x4xf32, #tpu.memory_space<vmem>>, vector<1x1x4xf32>
    %46 = vector.shape_cast %45 : vector<1x1x4xf32> to vector<4xf32>
    %47 = vector.shape_cast %46 : vector<4xf32> to vector<1x4xf32>
    %48 = vector.broadcast %47 : vector<1x4xf32> to vector<128x4xf32>
    %49 = arith.mulf %44, %48 : vector<128x4xf32>
    %50 = arith.addf %41, %49 : vector<128x4xf32>
    %51 = vector.extract_strided_slice %23 {offsets = [0, 0], sizes = [128, 4], strides = [1, 1]} : vector<160x4xf32> to vector<128x4xf32>
    %52 = vector.broadcast %33 : vector<128x1xf32> to vector<128x4xf32>
    %53 = arith.mulf %51, %52 : vector<128x4xf32>
    %c0_26 = arith.constant 0 : index
    %c2_27 = arith.constant 2 : index
    %c0_28 = arith.constant 0 : index
    %54 = vector.load %arg5[%c0_26, %c2_27, %c0_28] : memref<3x3x4xf32, #tpu.memory_space<vmem>>, vector<1x1x4xf32>
    %55 = vector.shape_cast %54 : vector<1x1x4xf32> to vector<4xf32>
    %56 = vector.shape_cast %55 : vector<4xf32> to vector<1x4xf32>
    %57 = vector.broadcast %56 : vector<1x4xf32> to vector<128x4xf32>
    %58 = arith.mulf %53, %57 : vector<128x4xf32>
    %59 = arith.addf %50, %58 : vector<128x4xf32>
    %60 = vector.extract_strided_slice %17 {offsets = [16, 0], sizes = [128, 4], strides = [1, 1]} : vector<160x4xf32> to vector<128x4xf32>
    %c1_29 = arith.constant 1 : index
    %c1_30 = arith.constant 1 : index
    %c0_31 = arith.constant 0 : index
    %61 = vector.load %arg5[%c1_29, %c1_30, %c0_31] : memref<3x3x4xf32, #tpu.memory_space<vmem>>, vector<1x1x4xf32>
    %62 = vector.shape_cast %61 : vector<1x1x4xf32> to vector<4xf32>
    %63 = vector.shape_cast %62 : vector<4xf32> to vector<1x4xf32>
    %64 = vector.broadcast %63 : vector<1x4xf32> to vector<128x4xf32>
    %65 = arith.mulf %60, %64 : vector<128x4xf32>
    %66 = arith.addf %59, %65 : vector<128x4xf32>
    %67 = vector.extract_strided_slice %22 {offsets = [16, 0], sizes = [128, 4], strides = [1, 1]} : vector<160x4xf32> to vector<128x4xf32>
    %68 = vector.broadcast %29 : vector<128x1xf32> to vector<128x4xf32>
    %69 = arith.mulf %67, %68 : vector<128x4xf32>
    %c1_32 = arith.constant 1 : index
    %c0_33 = arith.constant 0 : index
    %c0_34 = arith.constant 0 : index
    %70 = vector.load %arg5[%c1_32, %c0_33, %c0_34] : memref<3x3x4xf32, #tpu.memory_space<vmem>>, vector<1x1x4xf32>
    %71 = vector.shape_cast %70 : vector<1x1x4xf32> to vector<4xf32>
    %72 = vector.shape_cast %71 : vector<4xf32> to vector<1x4xf32>
    %73 = vector.broadcast %72 : vector<1x4xf32> to vector<128x4xf32>
    %74 = arith.mulf %69, %73 : vector<128x4xf32>
    %75 = arith.addf %66, %74 : vector<128x4xf32>
    %76 = vector.extract_strided_slice %23 {offsets = [16, 0], sizes = [128, 4], strides = [1, 1]} : vector<160x4xf32> to vector<128x4xf32>
    %77 = vector.broadcast %33 : vector<128x1xf32> to vector<128x4xf32>
    %78 = arith.mulf %76, %77 : vector<128x4xf32>
    %c1_35 = arith.constant 1 : index
    %c2_36 = arith.constant 2 : index
    %c0_37 = arith.constant 0 : index
    %79 = vector.load %arg5[%c1_35, %c2_36, %c0_37] : memref<3x3x4xf32, #tpu.memory_space<vmem>>, vector<1x1x4xf32>
    %80 = vector.shape_cast %79 : vector<1x1x4xf32> to vector<4xf32>
    %81 = vector.shape_cast %80 : vector<4xf32> to vector<1x4xf32>
    %82 = vector.broadcast %81 : vector<1x4xf32> to vector<128x4xf32>
    %83 = arith.mulf %78, %82 : vector<128x4xf32>
    %84 = arith.addf %75, %83 : vector<128x4xf32>
    %85 = vector.extract_strided_slice %17 {offsets = [32, 0], sizes = [128, 4], strides = [1, 1]} : vector<160x4xf32> to vector<128x4xf32>
    %c2_38 = arith.constant 2 : index
    %c1_39 = arith.constant 1 : index
    %c0_40 = arith.constant 0 : index
    %86 = vector.load %arg5[%c2_38, %c1_39, %c0_40] : memref<3x3x4xf32, #tpu.memory_space<vmem>>, vector<1x1x4xf32>
    %87 = vector.shape_cast %86 : vector<1x1x4xf32> to vector<4xf32>
    %88 = vector.shape_cast %87 : vector<4xf32> to vector<1x4xf32>
    %89 = vector.broadcast %88 : vector<1x4xf32> to vector<128x4xf32>
    %90 = arith.mulf %85, %89 : vector<128x4xf32>
    %91 = arith.addf %84, %90 : vector<128x4xf32>
    %92 = vector.extract_strided_slice %22 {offsets = [32, 0], sizes = [128, 4], strides = [1, 1]} : vector<160x4xf32> to vector<128x4xf32>
    %93 = vector.broadcast %29 : vector<128x1xf32> to vector<128x4xf32>
    %94 = arith.mulf %92, %93 : vector<128x4xf32>
    %c2_41 = arith.constant 2 : index
    %c0_42 = arith.constant 0 : index
    %c0_43 = arith.constant 0 : index
    %95 = vector.load %arg5[%c2_41, %c0_42, %c0_43] : memref<3x3x4xf32, #tpu.memory_space<vmem>>, vector<1x1x4xf32>
    %96 = vector.shape_cast %95 : vector<1x1x4xf32> to vector<4xf32>
    %97 = vector.shape_cast %96 : vector<4xf32> to vector<1x4xf32>
    %98 = vector.broadcast %97 : vector<1x4xf32> to vector<128x4xf32>
    %99 = arith.mulf %94, %98 : vector<128x4xf32>
    %100 = arith.addf %91, %99 : vector<128x4xf32>
    %101 = vector.extract_strided_slice %23 {offsets = [32, 0], sizes = [128, 4], strides = [1, 1]} : vector<160x4xf32> to vector<128x4xf32>
    %102 = vector.broadcast %33 : vector<128x1xf32> to vector<128x4xf32>
    %103 = arith.mulf %101, %102 : vector<128x4xf32>
    %c2_44 = arith.constant 2 : index
    %c2_45 = arith.constant 2 : index
    %c0_46 = arith.constant 0 : index
    %104 = vector.load %arg5[%c2_44, %c2_45, %c0_46] : memref<3x3x4xf32, #tpu.memory_space<vmem>>, vector<1x1x4xf32>
    %105 = vector.shape_cast %104 : vector<1x1x4xf32> to vector<4xf32>
    %106 = vector.shape_cast %105 : vector<4xf32> to vector<1x4xf32>
    %107 = vector.broadcast %106 : vector<1x4xf32> to vector<128x4xf32>
    %108 = arith.mulf %103, %107 : vector<128x4xf32>
    %109 = arith.addf %100, %108 : vector<128x4xf32>
    %c0_47 = arith.constant 0 : index
    %c0_48 = arith.constant 0 : index
    %110 = vector.load %arg6[%c0_47, %c0_48] : memref<8x4xf32, #tpu.memory_space<vmem>>, vector<8x4xf32>
    %cst_49 = arith.constant dense<0.000000e+00> : vector<8x128xf32>
    %111 = tpu.matmul %110, %109, %cst_49 {dimension_numbers = #tpu.dot_dimension_numbers<[1], [1], [0], [0], [0, 0, 1, 0], [], []>} : vector<8x4xf32>, vector<128x4xf32>, vector<8x128xf32> -> vector<8x128xf32>
    %c0_50 = arith.constant 0 : index
    %c0_51 = arith.constant 0 : index
    %112 = vector.load %arg7[%c0_50, %c0_51] : memref<8x1xf32, #tpu.memory_space<vmem>>, vector<8x1xf32>
    %113 = vector.broadcast %112 : vector<8x1xf32> to vector<8x128xf32>
    %114 = arith.addf %111, %113 : vector<8x128xf32>
    %cst_52 = arith.constant 0.000000e+00 : f32
    %115 = vector.broadcast %cst_52 : f32 to vector<8x128xf32>
    %116 = arith.maximumf %114, %115 : vector<8x128xf32>
    %c0_53 = arith.constant 0 : index
    %c0_54 = arith.constant 0 : index
    %c0_55 = arith.constant 0 : index
    %117 = vector.load %arg8[%c0_53, %c0_54, %c0_55] : memref<1x8x128xf32, #tpu.memory_space<vmem>>, vector<1x8x128xf32>
    %118 = vector.shape_cast %117 : vector<1x8x128xf32> to vector<8x128xf32>
    %119 = vector.shape_cast %116 : vector<8x128xf32> to vector<1x8x128xf32>
    tpu.vector_store %arg8[%c0_53, %c0_54, %c0_55], %119 {strides = array<i32>} : memref<1x8x128xf32, #tpu.memory_space<vmem>>, vector<1x8x128xf32>,
    return
  }
  func.func @transform_0(%arg0: i32, %arg1: i32) -> (i32, i32, i32, i32) {
    %c0_i32 = arith.constant 0 : i32
    %c0_i32_0 = arith.constant 0 : i32
    %c0_i32_1 = arith.constant 0 : i32
    return %arg0, %arg1, %c0_i32, %c0_i32_0 : i32, i32, i32, i32
  }
  func.func @transform_1(%arg0: i32, %arg1: i32) -> (i32, i32, i32, i32) {
    %c8_i32 = arith.constant 8 : i32
    %0 = arith.muli %arg1, %c8_i32 : i32
    %c1_i32 = arith.constant 1 : i32
    %1 = arith.subi %0, %c1_i32 : i32
    %c0_i32 = arith.constant 0 : i32
    %2 = arith.maxsi %1, %c0_i32 : i32
    %c0_i32_0 = arith.constant 0 : i32
    %c0_i32_1 = arith.constant 0 : i32
    %c0_i32_2 = arith.constant 0 : i32
    return %arg0, %2, %c0_i32_0, %c0_i32_1 : i32, i32, i32, i32
  }
  func.func @transform_2(%arg0: i32, %arg1: i32) -> (i32, i32, i32, i32) {
    %c8_i32 = arith.constant 8 : i32
    %0 = arith.muli %arg1, %c8_i32 : i32
    %c8_i32_0 = arith.constant 8 : i32
    %1 = arith.addi %0, %c8_i32_0 : i32
    %c15_i32 = arith.constant 15 : i32
    %2 = arith.minsi %1, %c15_i32 : i32
    %c0_i32 = arith.constant 0 : i32
    %c0_i32_1 = arith.constant 0 : i32
    %c0_i32_2 = arith.constant 0 : i32
    return %arg0, %2, %c0_i32, %c0_i32_1 : i32, i32, i32, i32
  }
  func.func @transform_3(%arg0: i32, %arg1: i32) -> (i32, i32, i32) {
    %c0_i32 = arith.constant 0 : i32
    %c0_i32_0 = arith.constant 0 : i32
    %c0_i32_1 = arith.constant 0 : i32
    %c0_i32_2 = arith.constant 0 : i32
    return %c0_i32, %c0_i32_0, %c0_i32_1 : i32, i32, i32
  }
  func.func @transform_4(%arg0: i32, %arg1: i32) -> (i32, i32) {
    %c0_i32 = arith.constant 0 : i32
    %c0_i32_0 = arith.constant 0 : i32
    %c0_i32_1 = arith.constant 0 : i32
    return %c0_i32, %c0_i32_0 : i32, i32
  }
  func.func @transform_5(%arg0: i32, %arg1: i32) -> (i32, i32) {
    %c0_i32 = arith.constant 0 : i32
    %c0_i32_0 = arith.constant 0 : i32
    %c0_i32_1 = arith.constant 0 : i32
    return %c0_i32, %c0_i32_0 : i32, i32
  }
  func.func @transform_6(%arg0: i32, %arg1: i32) -> (i32, i32, i32) {
    %c0_i32 = arith.constant 0 : i32
    %c0_i32_0 = arith.constant 0 : i32
    return %arg0, %c0_i32, %arg1 : i32, i32, i32
  }
}

</mosaic_0001>

<llo_original>
// kernel: tpu_custom_call.1
$region0: #{tpu_custom_call.1}
  #allocation0 [shape = 'u32[]', space=smem, size = 0x4, offset = 0x4, fixed_abs, tag = 'smem constant byte address 0x4 - core index']
  #allocation1 [shape = 'u32[144,128]{1,0:T(1,128)}', space=vmem, size = 0x12000, scoped, tag = 'internal scratch']
  #allocation2 [shape = 'f32[162,4]{1,0:T(8,128)}', space=vmem, size = 0x15000, scoped, tag = 'scratch operand']
  %s0 = inlined_call_operand.vmem [shape: f32[2,16,16,4], index: 0, kind: input, shape index: {}]
  %s1 = inlined_call_operand.vmem [shape: f32[2,16,16,4], index: 1, kind: input, shape index: {}]
  %s2 = inlined_call_operand.vmem [shape: f32[2,16,16,4], index: 2, kind: input, shape index: {}]
  %s3 = inlined_call_operand.vmem [shape: f32[3,3,4], index: 3, kind: input, shape index: {}]
  %s4 = inlined_call_operand.vmem [shape: f32[8,4], index: 4, kind: input, shape index: {}]
  %s5 = inlined_call_operand.vmem [shape: f32[8,1], index: 5, kind: input, shape index: {}]
  %s6 = inlined_call_operand.hbm [shape: f32[2,8,256], index: 6, kind: output, shape index: {}]
  %s7 = sld [smem:[#allocation0]]
  $region57: #{tpu_custom_call.1} parent=0
    _
  %s9 = ssub.s32 1, %s7
  %s10 = scalar_select 0, %s9, %s7
  $region1: #{tpu_custom_call.1} parent=0
    #allocation3 [shape = 'u8[8192]{0}', space=vmem, size = 0x2000, scoped, tag = 'output window, operand 0']
    #allocation4 [shape = 's32[2]{0}', space=sflag, size = 0x8, scoped, tag = 'scoped memory for tpu_custom_call.1']
    %11 = vsyncpa [#allocation4], 0
    %s12 = scalar_lea.sflag [#allocation4], 1
    %13 = vsyncpa %s12, 0
    loop: start=0, step=1, limit=6
    $region2: #{tpu_custom_call.1} parent=1 // loop_pre_header
      _
    $region3: #{tpu_custom_call.1} parent=1 // loop_header
      %s15 = sphi 0, %s19
      %p16 = scmp.ge.s32.totalorder %s15, 6
      %s22 = sphi 0, %s34
      %s23 = sphi 0, %s30
      %s24 = sphi 0, %s22
      %s25 = sphi 0, %s23
      %s26 = sphi 0, %s24
      %s27 = sphi 0, %s25
      %s39 = sphi 0, %s41
      %s42 = sphi 0, %s39
      %s43 = sphi 0, %s42
      %s59 = sphi 0, %s43
      %s75 = sphi 0, %s77
      %s78 = sphi 0, %s75
      %s79 = sphi 0, %s78
      %s95 = sphi 0, %s79
      %s111 = sphi 0, %s113
      %s114 = sphi 0, %s111
      %s115 = sphi 0, %s114
      %s131 = sphi 0, %s115
      %s135 = sphi 0, %s135
      %s137 = sphi 0, %s135
      %s138 = sphi 0, %s137
      %s152 = sphi 0, %s138
      %s156 = sphi 0, %s156
      %s158 = sphi 0, %s156
      %s159 = sphi 0, %s158
      %s173 = sphi 0, %s159
      %s177 = sphi 0, %s177
      %s179 = sphi 0, %s177
      %s180 = sphi 0, %s179
      %s194 = sphi 0, %s180
      %s202 = sphi 0, %s204
      %s205 = sphi 0, %s202
      %s206 = sphi 0, %s205
      %s222 = sphi 0, %s206
    $region4: #{tpu_custom_call.1} parent=1 // loop_header_branch
      %18 = sbr.rel (%p16) target = $region8
    $region5: #{tpu_custom_call.1} parent=1 // loop_body
      %s20 = ssub.s32 %s15, 1
      %s21 = ssub.s32 %s15, 2
      %s28 = sadd.s32 1, %s23
      %p29 = scmp.ge.s32.totalorder %s28, 2
      %s30 = scalar_select %p29, 0, %s28
      %s31 = sadd.s32 1, %s22
      %s32 = scalar_select %p29, %s31, %s22
      %p33 = scmp.ge.s32.totalorder %s32, 2
      %s34 = scalar_select %p33, 0, %s32
      %s35 = ssub.s32 %s22, %s34
      %s36 = ssub.s32 %s23, %s30
      %s37 = sor.u32 %s35, %s36
      %p38 = scmp.eq.s32.totalorder %s37, 0
      %s40 = sadd.s32 %s39, 1
      %s41 = scalar_select %p38, %s39, %s40
      %p44 = pneg %p38
      %p45 = scmp.eq.s32.totalorder %s15, 3
      %p46 = por %p44, %p45
      %p47 = scmp.ne.s32.totalorder %s39, %s42
      %p48 = scmp.eq.s32.totalorder %s15, 0
      %p49 = por %p47, %p48
      %p50 = scmp.ne.s32.totalorder %s39, %s42
      %p51 = scmp.eq.s32.totalorder %s20, 3
      %p52 = por %p50, %p51
      %p53 = scmp.ne.s32.totalorder %s42, %s43
      %p54 = scmp.eq.s32.totalorder %s20, 0
      %p55 = por %p53, %p54
      %p56 = scmp.ne.s32.totalorder %s42, %s43
      %p57 = scmp.eq.s32.totalorder %s21, 3
      %p58 = por %p56, %p57
      %p60 = scmp.ne.s32.totalorder %s43, %s59
      %p61 = scmp.eq.s32.totalorder %s21, 0
      %p62 = por %p60, %p61
      %s63 = smul.u32 %s23, 8
      %s64 = ssub.s32 %s63, 1
      %p65 = scmp.gt.s32.totalorder %s64, 0
      %s66 = scalar_select %p65, %s64, 0
      %s67 = smul.u32 %s30, 8
      %s68 = ssub.s32 %s67, 1
      %p69 = scmp.gt.s32.totalorder %s68, 0
      %s70 = scalar_select %p69, %s68, 0
      %s71 = ssub.s32 %s22, %s34
      %s72 = ssub.s32 %s66, %s70
      %s73 = sor.u32 %s71, %s72
      %p74 = scmp.eq.s32.totalorder %s73, 0
      %s76 = sadd.s32 %s75, 1
      %s77 = scalar_select %p74, %s75, %s76
      %p80 = pneg %p74
      %p81 = scmp.eq.s32.totalorder %s15, 3
      %p82 = por %p80, %p81
      %p83 = scmp.ne.s32.totalorder %s75, %s78
      %p84 = scmp.eq.s32.totalorder %s15, 0
      %p85 = por %p83, %p84
      %p86 = scmp.ne.s32.totalorder %s75, %s78
      %p87 = scmp.eq.s32.totalorder %s20, 3
      %p88 = por %p86, %p87
      %p89 = scmp.ne.s32.totalorder %s78, %s79
      %p90 = scmp.eq.s32.totalorder %s20, 0
      %p91 = por %p89, %p90
      %p92 = scmp.ne.s32.totalorder %s78, %s79
      %p93 = scmp.eq.s32.totalorder %s21, 3
      %p94 = por %p92, %p93
      %p96 = scmp.ne.s32.totalorder %s79, %s95
      %p97 = scmp.eq.s32.totalorder %s21, 0
      %p98 = por %p96, %p97
      %s99 = smul.u32 %s23, 8
      %s100 = sadd.s32 %s99, 8
      %p101 = scmp.lt.s32.totalorder %s100, 15
      %s102 = scalar_select %p101, %s100, 15
      %s103 = smul.u32 %s30, 8
      %s104 = sadd.s32 %s103, 8
      %p105 = scmp.lt.s32.totalorder %s104, 15
      %s106 = scalar_select %p105, %s104, 15
      %s107 = ssub.s32 %s22, %s34
      %s108 = ssub.s32 %s102, %s106
      %s109 = sor.u32 %s107, %s108
      %p110 = scmp.eq.s32.totalorder %s109, 0
      %s112 = sadd.s32 %s111, 1
      %s113 = scalar_select %p110, %s111, %s112
      %p116 = pneg %p110
      %p117 = scmp.eq.s32.totalorder %s15, 3
      %p118 = por %p116, %p117
      %p119 = scmp.ne.s32.totalorder %s111, %s114
      %p120 = scmp.eq.s32.totalorder %s15, 0
      %p121 = por %p119, %p120
      %p122 = scmp.ne.s32.totalorder %s111, %s114
      %p123 = scmp.eq.s32.totalorder %s20, 3
      %p124 = por %p122, %p123
      %p125 = scmp.ne.s32.totalorder %s114, %s115
      %p126 = scmp.eq.s32.totalorder %s20, 0
      %p127 = por %p125, %p126
      %p128 = scmp.ne.s32.totalorder %s114, %s115
      %p129 = scmp.eq.s32.totalorder %s21, 3
      %p130 = por %p128, %p129
      %p132 = scmp.ne.s32.totalorder %s115, %s131
      %p133 = scmp.eq.s32.totalorder %s21, 0
      %p134 = por %p132, %p133
      %s136 = sadd.s32 %s135, 1
      %p139 = scmp.eq.s32.totalorder %s15, 3
      %p140 = scmp.ne.s32.totalorder %s135, %s137
      %p141 = scmp.eq.s32.totalorder %s15, 0
      %p142 = por %p140, %p141
      %p143 = scmp.ne.s32.totalorder %s135, %s137
      %p144 = scmp.eq.s32.totalorder %s20, 3
      %p145 = por %p143, %p144
      %p146 = scmp.ne.s32.totalorder %s137, %s138
      %p147 = scmp.eq.s32.totalorder %s20, 0
      %p148 = por %p146, %p147
      %p149 = scmp.ne.s32.totalorder %s137, %s138
      %p150 = scmp.eq.s32.totalorder %s21, 3
      %p151 = por %p149, %p150
      %p153 = scmp.ne.s32.totalorder %s138, %s152
      %p154 = scmp.eq.s32.totalorder %s21, 0
      %p155 = por %p153, %p154
      %s157 = sadd.s32 %s156, 1
      %p160 = scmp.eq.s32.totalorder %s15, 3
      %p161 = scmp.ne.s32.totalorder %s156, %s158
      %p162 = scmp.eq.s32.totalorder %s15, 0
      %p163 = por %p161, %p162
      %p164 = scmp.ne.s32.totalorder %s156, %s158
      %p165 = scmp.eq.s32.totalorder %s20, 3
      %p166 = por %p164, %p165
      %p167 = scmp.ne.s32.totalorder %s158, %s159
      %p168 = scmp.eq.s32.totalorder %s20, 0
      %p169 = por %p167, %p168
      %p170 = scmp.ne.s32.totalorder %s158, %s159
      %p171 = scmp.eq.s32.totalorder %s21, 3
      %p172 = por %p170, %p171
      %p174 = scmp.ne.s32.totalorder %s159, %s173
      %p175 = scmp.eq.s32.totalorder %s21, 0
      %p176 = por %p174, %p175
      %s178 = sadd.s32 %s177, 1
      %p181 = scmp.eq.s32.totalorder %s15, 3
      %p182 = scmp.ne.s32.totalorder %s177, %s179
      %p183 = scmp.eq.s32.totalorder %s15, 0
      %p184 = por %p182, %p183
      %p185 = scmp.ne.s32.totalorder %s177, %s179
      %p186 = scmp.eq.s32.totalorder %s20, 3
      %p187 = por %p185, %p186
      %p188 = scmp.ne.s32.totalorder %s179, %s180
      %p189 = scmp.eq.s32.totalorder %s20, 0
      %p190 = por %p188, %p189
      %p191 = scmp.ne.s32.totalorder %s179, %s180
      %p192 = scmp.eq.s32.totalorder %s21, 3
      %p193 = por %p191, %p192
      %p195 = scmp.ne.s32.totalorder %s180, %s194
      %p196 = scmp.eq.s32.totalorder %s21, 0
      %p197 = por %p195, %p196
      %s198 = ssub.s32 %s22, %s34
      %s199 = ssub.s32 %s23, %s30
      %s200 = sor.u32 %s198, %s199
      %p201 = scmp.eq.s32.totalorder %s200, 0
      %s203 = sadd.s32 %s202, 1
      %s204 = scalar_select %p201, %s202, %s203
      %p207 = pneg %p201
      %p208 = scmp.eq.s32.totalorder %s15, 3
      %p209 = por %p207, %p208
      %p210 = scmp.ne.s32.totalorder %s202, %s205
      %p211 = scmp.eq.s32.totalorder %s15, 0
      %p212 = por %p210, %p211
      %p213 = scmp.ne.s32.totalorder %s202, %s205
      %p214 = scmp.eq.s32.totalorder %s20, 3
      %p215 = por %p213, %p214
      %p216 = scmp.ne.s32.totalorder %s205, %s206
      %p217 = scmp.eq.s32.totalorder %s20, 0
      %p218 = por %p216, %p217
      %p219 = scmp.ne.s32.totalorder %s205, %s206
      %p220 = scmp.eq.s32.totalorder %s21, 3
      %p221 = por %p219, %p220
      %p223 = scmp.ne.s32.totalorder %s206, %s222
      %p224 = scmp.eq.s32.totalorder %s21, 0
      %p225 = por %p223, %p224
      %p226 = scmp.le.s32.totalorder 1, %s15
      %p227 = scmp.lt.s32.totalorder %s15, 5
      %p228 = pnand %p226, %p227
      %p229 = pneg %p228
      // Predicated region
      $region9: #{tpu_custom_call.1} parent=5 // pred_check
        _
      $region10: #{tpu_custom_call.1} parent=5 // pred_check_branch
        %231 = sbr.rel (%p228) target = $region12
      $region11: #{tpu_custom_call.1} parent=5 // pred_region
        %s232 = ssub.s32 %s15, 1
        // Predicated region
        $region13: #{tpu_custom_call.1} parent=11 // pred_check
          %p233 = pneg %p148
        $region14: #{tpu_custom_call.1} parent=11 // pred_check_branch
          %235 = sbr.rel (%p233) target = $region16
        $region15: #{tpu_custom_call.1} parent=11 // pred_region
          _
        $region16: #{tpu_custom_call.1} parent=11 // pred_fallthru
          _
        // Predicated region
        $region17: #{tpu_custom_call.1} parent=11 // pred_check
          %p236 = pneg %p169
        $region18: #{tpu_custom_call.1} parent=11 // pred_check_branch
          %238 = sbr.rel (%p236) target = $region20
        $region19: #{tpu_custom_call.1} parent=11 // pred_region
          _
        $region20: #{tpu_custom_call.1} parent=11 // pred_fallthru
          _
        // Predicated region
        $region21: #{tpu_custom_call.1} parent=11 // pred_check
          %p239 = pneg %p190
        $region22: #{tpu_custom_call.1} parent=11 // pred_check_branch
          %241 = sbr.rel (%p239) target = $region24
        $region23: #{tpu_custom_call.1} parent=11 // pred_region
          _
        $region24: #{tpu_custom_call.1} parent=11 // pred_fallthru
          _
      $region12: #{tpu_custom_call.1} parent=5 // pred_fallthru
        _
      %p242 = scmp.lt.s32.totalorder %s15, 4
      // Predicated region
      $region25: #{tpu_custom_call.1} parent=5 // pred_check
        %p243 = pneg %p242
      $region26: #{tpu_custom_call.1} parent=5 // pred_check_branch
        %245 = sbr.rel (%p243) target = $region28
      $region27: #{tpu_custom_call.1} parent=5 // pred_region
        // Predicated region
        $region29: #{tpu_custom_call.1} parent=27 // pred_check
          %p246 = pneg %p49
        $region30: #{tpu_custom_call.1} parent=27 // pred_check_branch
          %248 = sbr.rel (%p246) target = $region32
        $region31: #{tpu_custom_call.1} parent=27 // pred_region
          %s249 = smul.u32 8, %s23
          %p250 = scmp.lt.s32.totalorder %s22, 1
          %s251 = scalar_select %p250, %s22, 1
          %p252 = scmp.lt.s32.totalorder %s249, 15
          %s253 = scalar_select %p252, %s249, 15
          %s254 = smul.addr %s253, 2
          %s255 = smul.addr %s251, 32
          %s256 = sadd.s32 %s254, %s255
          %s257 = smul.addr %s256, 8
          %s258 = scalar_lea.vmem %s0, %s257
          %s259 = smul.u32 8, %s23
        $region32: #{tpu_custom_call.1} parent=27 // pred_fallthru
          _
        // Predicated region
        $region33: #{tpu_custom_call.1} parent=27 // pred_check
          %p260 = pneg %p85
        $region34: #{tpu_custom_call.1} parent=27 // pred_check_branch
          %262 = sbr.rel (%p260) target = $region36
        $region35: #{tpu_custom_call.1} parent=27 // pred_region
          %s263 = smul.u32 %s23, 8
          %s264 = ssub.s32 %s263, 1
          %p265 = scmp.gt.s32.totalorder %s264, 0
          %s266 = scalar_select %p265, %s264, 0
          %p267 = scmp.lt.s32.totalorder %s22, 1
          %s268 = scalar_select %p267, %s22, 1
          %p269 = scmp.lt.s32.totalorder %s266, 15
          %s270 = scalar_select %p269, %s266, 15
          %s271 = smul.addr %s270, 2
          %s272 = smul.addr %s268, 32
          %s273 = sadd.s32 %s271, %s272
          %s274 = smul.addr %s273, 8
          %s275 = scalar_lea.vmem %s1, %s274
          %s276 = smul.u32 %s23, 8
          %s277 = ssub.s32 %s276, 1
          %p278 = scmp.gt.s32.totalorder %s277, 0
          %s279 = scalar_select %p278, %s277, 0
        $region36: #{tpu_custom_call.1} parent=27 // pred_fallthru
          _
        // Predicated region
        $region37: #{tpu_custom_call.1} parent=27 // pred_check
          %p280 = pneg %p121
        $region38: #{tpu_custom_call.1} parent=27 // pred_check_branch
          %282 = sbr.rel (%p280) target = $region40
        $region39: #{tpu_custom_call.1} parent=27 // pred_region
          %s283 = smul.u32 %s23, 8
          %s284 = sadd.s32 %s283, 8
          %p285 = scmp.lt.s32.totalorder %s284, 15
          %s286 = scalar_select %p285, %s284, 15
          %p287 = scmp.lt.s32.totalorder %s22, 1
          %s288 = scalar_select %p287, %s22, 1
          %p289 = scmp.lt.s32.totalorder %s286, 15
          %s290 = scalar_select %p289, %s286, 15
          %s291 = smul.addr %s290, 2
          %s292 = smul.addr %s288, 32
          %s293 = sadd.s32 %s291, %s292
          %s294 = smul.addr %s293, 8
          %s295 = scalar_lea.vmem %s2, %s294
          %s296 = smul.u32 %s23, 8
          %s297 = sadd.s32 %s296, 8
          %p298 = scmp.lt.s32.totalorder %s297, 15
          %s299 = scalar_select %p298, %s297, 15
        $region40: #{tpu_custom_call.1} parent=27 // pred_fallthru
          _
      $region28: #{tpu_custom_call.1} parent=5 // pred_fallthru
        _
      %p300 = scmp.le.s32.totalorder 1, %s15
      %p301 = scmp.lt.s32.totalorder %s15, 5
      %p302 = pnand %p300, %p301
      %p303 = pneg %p302
      // Predicated region
      $region41: #{tpu_custom_call.1} parent=5 // pred_check
        _
      $region42: #{tpu_custom_call.1} parent=5 // pred_check_branch
        %305 = sbr.rel (%p302) target = $region44
      $region43: #{tpu_custom_call.1} parent=5 // pred_region
        %s306 = ssub.s32 %s15, 1
        %s307 = smul.u32 8, %s25
        %p308 = scmp.lt.s32.totalorder %s24, 1
        %s309 = scalar_select %p308, %s24, 1
        %p310 = scmp.lt.s32.totalorder %s307, 15
        %s311 = scalar_select %p310, %s307, 15
        %s312 = smul.addr %s311, 2
        %s313 = smul.addr %s309, 32
        %s314 = sadd.s32 %s312, %s313
        %s315 = smul.addr %s314, 8
        %s316 = scalar_lea.vmem %s0, %s315
        %p317 = pneg %p55
        %p318 = pneg %p52
        %s319 = smul.u32 %s25, 8
        %s320 = ssub.s32 %s319, 1
        %p321 = scmp.gt.s32.totalorder %s320, 0
        %s322 = scalar_select %p321, %s320, 0
        %p323 = scmp.lt.s32.totalorder %s24, 1
        %s324 = scalar_select %p323, %s24, 1
        %p325 = scmp.lt.s32.totalorder %s322, 15
        %s326 = scalar_select %p325, %s322, 15
        %s327 = smul.addr %s326, 2
        %s328 = smul.addr %s324, 32
        %s329 = sadd.s32 %s327, %s328
        %s330 = smul.addr %s329, 8
        %s331 = scalar_lea.vmem %s1, %s330
        %p332 = pneg %p91
        %p333 = pneg %p88
        %s334 = smul.u32 %s25, 8
        %s335 = sadd.s32 %s334, 8
        %p336 = scmp.lt.s32.totalorder %s335, 15
        %s337 = scalar_select %p336, %s335, 15
        %p338 = scmp.lt.s32.totalorder %s24, 1
        %s339 = scalar_select %p338, %s24, 1
        %p340 = scmp.lt.s32.totalorder %s337, 15
        %s341 = scalar_select %p340, %s337, 15
        %s342 = smul.addr %s341, 2
        %s343 = smul.addr %s339, 32
        %s344 = sadd.s32 %s342, %s343
        %s345 = smul.addr %s344, 8
        %s346 = scalar_lea.vmem %s2, %s345
        %p347 = pneg %p127
        %p348 = pneg %p124
        %p349 = pneg %p148
        %p350 = pneg %p145
        %p351 = pneg %p169
        %p352 = pneg %p166
        %p353 = pneg %p190
        %p354 = pneg %p187
        %p355 = pneg %p218
        %p356 = pneg %p215
        %s357 = sand.u32 %s205, 1
        %s358 = scalar_lea.sflag [#allocation4], %s357
        %s359 = sand.u32 %s205, 1
        %s360 = smul.addr %s359, 8
        %s361 = scalar_lea.vmem [#allocation3], %s360
        %s362 = smul.u32 8, %s25
        %p363 = scmp.lt.s32.totalorder %s24, 1
        %s364 = scalar_select %p363, %s24, 1
        %p365 = scmp.lt.s32.totalorder %s362, 15
        %s366 = scalar_select %p365, %s362, 15
        %s367 = smul.addr %s366, 2
        %s368 = smul.addr %s364, 32
        %s369 = sadd.s32 %s367, %s368
        %s370 = smul.addr %s369, 8
        %s371 = scalar_lea.vmem %s0, %s370
        %s372 = smul.u32 8, %s25
        %s373 = smul.u32 %s25, 8
        %s374 = ssub.s32 %s373, 1
        %p375 = scmp.gt.s32.totalorder %s374, 0
        %s376 = scalar_select %p375, %s374, 0
        %p377 = scmp.lt.s32.totalorder %s24, 1
        %s378 = scalar_select %p377, %s24, 1
        %p379 = scmp.lt.s32.totalorder %s376, 15
        %s380 = scalar_select %p379, %s376, 15
        %s381 = smul.addr %s380, 2
        %s382 = smul.addr %s378, 32
        %s383 = sadd.s32 %s381, %s382
        %s384 = smul.addr %s383, 8
        %s385 = scalar_lea.vmem %s1, %s384
        %s386 = smul.u32 %s25, 8
        %s387 = ssub.s32 %s386, 1
        %p388 = scmp.gt.s32.totalorder %s387, 0
        %s389 = scalar_select %p388, %s387, 0
        %s390 = smul.u32 %s25, 8
        %s391 = sadd.s32 %s390, 8
        %p392 = scmp.lt.s32.totalorder %s391, 15
        %s393 = scalar_select %p392, %s391, 15
        %p394 = scmp.lt.s32.totalorder %s24, 1
        %s395 = scalar_select %p394, %s24, 1
        %p396 = scmp.lt.s32.totalorder %s393, 15
        %s397 = scalar_select %p396, %s393, 15
        %s398 = smul.addr %s397, 2
        %s399 = smul.addr %s395, 32
        %s400 = sadd.s32 %s398, %s399
        %s401 = smul.addr %s400, 8
        %s402 = scalar_lea.vmem %s2, %s401
        %s403 = smul.u32 %s25, 8
        %s404 = sadd.s32 %s403, 8
        %p405 = scmp.lt.s32.totalorder %s404, 15
        %s406 = scalar_select %p405, %s404, 15
        %p407 = scmp.gt.s32.totalorder %s25, 0
        %s408 = scalar_select %p407, 1, 0
        %s409 = scvt.s32.f32 %s408
        %p410 = scmp.lt.s32.totalorder %s25, 1
        %s411 = scalar_select %p410, 1, 0
        %s412 = scvt.s32.f32 %s411
        %v413 = vld [vmem:[%s385] sm:$0xff]
        %v414 = vld [vmem:[%s385 + $0x8] sm:$0xff]
        %v415 = vstv %s409
        %v416 = vmul.f32 %v413, %v415
        %v417 = vmul.f32 %v414, %v415
        %v418 = vld [vmem:[%s402] sm:$0xff]
        %v419 = vld [vmem:[%s402 + $0x8] sm:$0xff]
        %v420 = vstv %s412
        %v421 = vmul.f32 %v418, %v420
        %v422 = vmul.f32 %v419, %v420
        %v423 = vld [vmem:[%s371] sm:$0xff]
        %v424 = vld [vmem:[%s371 + $0x8] sm:$0xff]
        %v425 = vld [vmem:[%s371 + $0x10] sm:$0xff]
        %v426 = vld [vmem:[%s371 + $0x18] sm:$0xff]
        %v427 = vld [vmem:[%s371 + $0x20] sm:$0xff]
        %v428 = vld [vmem:[%s371 + $0x28] sm:$0xff]
        %v429 = vld [vmem:[%s371 + $0x30] sm:$0xff]
        %v430 = vld [vmem:[%s371 + $0x38] sm:$0xff]
        %v431 = vld [vmem:[%s371 + $0x40] sm:$0xff]
        %v432 = vld [vmem:[%s371 + $0x48] sm:$0xff]
        %v433 = vld [vmem:[%s371 + $0x50] sm:$0xff]
        %v434 = vld [vmem:[%s371 + $0x58] sm:$0xff]
        %v435 = vld [vmem:[%s371 + $0x60] sm:$0xff]
        %v436 = vld [vmem:[%s371 + $0x68] sm:$0xff]
        %v437 = vld [vmem:[%s371 + $0x70] sm:$0xff]
        %v438 = vld [vmem:[%s371 + $0x78] sm:$0xff]
        %vm439 = vcmask 24576
        %440 = vst.msk [vmem:[#allocation2] sm:$0x1] %vm439, 0.0
        %441 = vst.msk [vmem:[#allocation2 + $0xa1] sm:$0x1] %vm439, 0.0
        %vm442 = vcmask 31744
        %443 = vst.msk [vmem:[#allocation2 + $0x1] sm:$0xff] %vm442, %v416
        %444 = vst.msk [vmem:[#allocation2 + $0x9] sm:$0xff] %vm442, %v417
        %445 = vst.msk [vmem:[#allocation2 + $0x11] sm:$0xff] %vm442, %v423
        %446 = vst.msk [vmem:[#allocation2 + $0x19] sm:$0xff] %vm442, %v424
        %447 = vst.msk [vmem:[#allocation2 + $0x21] sm:$0xff] %vm442, %v425
        %448 = vst.msk [vmem:[#allocation2 + $0x29] sm:$0xff] %vm442, %v426
        %449 = vst.msk [vmem:[#allocation2 + $0x31] sm:$0xff] %vm442, %v427
        %450 = vst.msk [vmem:[#allocation2 + $0x39] sm:$0xff] %vm442, %v428
        %451 = vst.msk [vmem:[#allocation2 + $0x41] sm:$0xff] %vm442, %v429
        %452 = vst.msk [vmem:[#allocation2 + $0x49] sm:$0xff] %vm442, %v430
        %453 = vst.msk [vmem:[#allocation2 + $0x51] sm:$0xff] %vm442, %v431
        %454 = vst.msk [vmem:[#allocation2 + $0x59] sm:$0xff] %vm442, %v432
        %455 = vst.msk [vmem:[#allocation2 + $0x61] sm:$0xff] %vm442, %v433
        %456 = vst.msk [vmem:[#allocation2 + $0x69] sm:$0xff] %vm442, %v434
        %457 = vst.msk [vmem:[#allocation2 + $0x71] sm:$0xff] %vm442, %v435
        %458 = vst.msk [vmem:[#allocation2 + $0x79] sm:$0xff] %vm442, %v436
        %459 = vst.msk [vmem:[#allocation2 + $0x81] sm:$0xff] %vm442, %v437
        %460 = vst.msk [vmem:[#allocation2 + $0x89] sm:$0xff] %vm442, %v438
        %461 = vst.msk [vmem:[#allocation2 + $0x91] sm:$0xff] %vm442, %v421
        %462 = vst.msk [vmem:[#allocation2 + $0x99] sm:$0xff] %vm442, %v422
        %v463 = vld [vmem:[#allocation2] sm:$0xff]
        %v464 = vld [vmem:[#allocation2 + $0x8] sm:$0xff]
        %v465 = vld [vmem:[#allocation2 + $0x10] sm:$0xff]
        %v466 = vld [vmem:[#allocation2 + $0x18] sm:$0xff]
        %v467 = vld [vmem:[#allocation2 + $0x20] sm:$0xff]
        %v468 = vld [vmem:[#allocation2 + $0x28] sm:$0xff]
        %v469 = vld [vmem:[#allocation2 + $0x30] sm:$0xff]
        %v470 = vld [vmem:[#allocation2 + $0x38] sm:$0xff]
        %v471 = vld [vmem:[#allocation2 + $0x40] sm:$0xff]
        %v472 = vld [vmem:[#allocation2 + $0x48] sm:$0xff]
        %v473 = vld [vmem:[#allocation2 + $0x50] sm:$0xff]
        %v474 = vld [vmem:[#allocation2 + $0x58] sm:$0xff]
        %v475 = vld [vmem:[#allocation2 + $0x60] sm:$0xff]
        %v476 = vld [vmem:[#allocation2 + $0x68] sm:$0xff]
        %v477 = vld [vmem:[#allocation2 + $0x70] sm:$0xff]
        %v478 = vld [vmem:[#allocation2 + $0x78] sm:$0xff]
        %v479 = vld [vmem:[#allocation2 + $0x80] sm:$0xff]
        %v480 = vld [vmem:[#allocation2 + $0x88] sm:$0xff]
        %v481 = vld [vmem:[#allocation2 + $0x90] sm:$0xff]
        %v482 = vld [vmem:[#allocation2 + $0x98] sm:$0xff]
        %v483 = vld [vmem:[#allocation2 + $0x2] sm:$0xff]
        %v484 = vld [vmem:[#allocation2 + $0xa] sm:$0xff]
        %v485 = vld [vmem:[#allocation2 + $0x12] sm:$0xff]
        %v486 = vld [vmem:[#allocation2 + $0x1a] sm:$0xff]
        %v487 = vld [vmem:[#allocation2 + $0x22] sm:$0xff]
        %v488 = vld [vmem:[#allocation2 + $0x2a] sm:$0xff]
        %v489 = vld [vmem:[#allocation2 + $0x32] sm:$0xff]
        %v490 = vld [vmem:[#allocation2 + $0x3a] sm:$0xff]
        %v491 = vld [vmem:[#allocation2 + $0x42] sm:$0xff]
        %v492 = vld [vmem:[#allocation2 + $0x4a] sm:$0xff]
        %v493 = vld [vmem:[#allocation2 + $0x52] sm:$0xff]
        %v494 = vld [vmem:[#allocation2 + $0x5a] sm:$0xff]
        %v495 = vld [vmem:[#allocation2 + $0x62] sm:$0xff]
        %v496 = vld [vmem:[#allocation2 + $0x6a] sm:$0xff]
        %v497 = vld [vmem:[#allocation2 + $0x72] sm:$0xff]
        %v498 = vld [vmem:[#allocation2 + $0x7a] sm:$0xff]
        %v499 = vld [vmem:[#allocation2 + $0x82] sm:$0xff]
        %v500 = vld [vmem:[#allocation2 + $0x8a] sm:$0xff]
        %v501 = vld [vmem:[#allocation2 + $0x92] sm:$0xff]
        %v502 = vld [vmem:[#allocation2 + $0x9a] sm:$0xff]
        %v503 = vlaneseq
        %v504 = vshrl.u32 %v503, 7
        %v505 = vadd.s32 %v504, 8
        %vm506 = vcmp.ge.s32.totalorder %v504, 1
        %vm507 = vcmp.ge.s32.totalorder %v505, 1
        %v508 = vsel %vm506, 1, 0
        %v509 = vsel %vm507, 1, 0
        %v510 = vcvt.s32.f32 %v508
        %v511 = vcvt.s32.f32 %v509
        %vm512 = vcmp.le.s32.totalorder %v504, 14
        %vm513 = vcmp.le.s32.totalorder %v505, 14
        %v514 = vsel %vm512, 1, 0
        %v515 = vsel %vm513, 1, 0
        %v516 = vcvt.s32.f32 %v514
        %v517 = vcvt.s32.f32 %v515
        %v518 = vld [vmem:[%s3 + $0x1] sm:$0x1]
        %v519 = vlaneseq
        %v520 = vshrl.u32 %v519, 7
        %v521 = vsub.s32 0, %v520
        %v522 = vrot.slane %v518, %v521
        %v523 = vmul.f32 %v416, %v522
        %v524 = vmul.f32 %v417, %v522
        %v525 = vmul.f32 %v423, %v522
        %v526 = vmul.f32 %v424, %v522
        %v527 = vmul.f32 %v425, %v522
        %v528 = vmul.f32 %v426, %v522
        %v529 = vmul.f32 %v427, %v522
        %v530 = vmul.f32 %v428, %v522
        %v531 = vmul.f32 %v429, %v522
        %v532 = vmul.f32 %v430, %v522
        %v533 = vmul.f32 %v431, %v522
        %v534 = vmul.f32 %v432, %v522
        %v535 = vmul.f32 %v433, %v522
        %v536 = vmul.f32 %v434, %v522
        %v537 = vmul.f32 %v435, %v522
        %v538 = vmul.f32 %v436, %v522
        %v539 = vadd.f32 %v523, 0.0
        %v540 = vadd.f32 %v524, 0.0
        %v541 = vadd.f32 %v525, 0.0
        %v542 = vadd.f32 %v526, 0.0
        %v543 = vadd.f32 %v527, 0.0
        %v544 = vadd.f32 %v528, 0.0
        %v545 = vadd.f32 %v529, 0.0
        %v546 = vadd.f32 %v530, 0.0
        %v547 = vadd.f32 %v531, 0.0
        %v548 = vadd.f32 %v532, 0.0
        %v549 = vadd.f32 %v533, 0.0
        %v550 = vadd.f32 %v534, 0.0
        %v551 = vadd.f32 %v535, 0.0
        %v552 = vadd.f32 %v536, 0.0
        %v553 = vadd.f32 %v537, 0.0
        %v554 = vadd.f32 %v538, 0.0
        %v555 = vmul.f32 %v463, %v510
        %v556 = vmul.f32 %v464, %v511
        %v557 = vmul.f32 %v465, %v510
        %v558 = vmul.f32 %v466, %v511
        %v559 = vmul.f32 %v467, %v510
        %v560 = vmul.f32 %v468, %v511
        %v561 = vmul.f32 %v469, %v510
        %v562 = vmul.f32 %v470, %v511
        %v563 = vmul.f32 %v471, %v510
        %v564 = vmul.f32 %v472, %v511
        %v565 = vmul.f32 %v473, %v510
        %v566 = vmul.f32 %v474, %v511
        %v567 = vmul.f32 %v475, %v510
        %v568 = vmul.f32 %v476, %v511
        %v569 = vmul.f32 %v477, %v510
        %v570 = vmul.f32 %v478, %v511
        %v571 = vld [vmem:[%s3] sm:$0x1]
        %v572 = vlaneseq
        %v573 = vshrl.u32 %v572, 7
        %v574 = vsub.s32 0, %v573
        %v575 = vrot.slane %v571, %v574
        %v576 = vmul.f32 %v555, %v575
        %v577 = vmul.f32 %v556, %v575
        %v578 = vmul.f32 %v557, %v575
        %v579 = vmul.f32 %v558, %v575
        %v580 = vmul.f32 %v559, %v575
        %v581 = vmul.f32 %v560, %v575
        %v582 = vmul.f32 %v561, %v575
        %v583 = vmul.f32 %v562, %v575
        %v584 = vmul.f32 %v563, %v575
        %v585 = vmul.f32 %v564, %v575
        %v586 = vmul.f32 %v565, %v575
        %v587 = vmul.f32 %v566, %v575
        %v588 = vmul.f32 %v567, %v575
        %v589 = vmul.f32 %v568, %v575
        %v590 = vmul.f32 %v569, %v575
        %v591 = vmul.f32 %v570, %v575
        %v592 = vadd.f32 %v539, %v576
        %v593 = vadd.f32 %v540, %v577
        %v594 = vadd.f32 %v541, %v578
        %v595 = vadd.f32 %v542, %v579
        %v596 = vadd.f32 %v543, %v580
        %v597 = vadd.f32 %v544, %v581
        %v598 = vadd.f32 %v545, %v582
        %v599 = vadd.f32 %v546, %v583
        %v600 = vadd.f32 %v547, %v584
        %v601 = vadd.f32 %v548, %v585
        %v602 = vadd.f32 %v549, %v586
        %v603 = vadd.f32 %v550, %v587
        %v604 = vadd.f32 %v551, %v588
        %v605 = vadd.f32 %v552, %v589
        %v606 = vadd.f32 %v553, %v590
        %v607 = vadd.f32 %v554, %v591
        %v608 = vmul.f32 %v483, %v516
        %v609 = vmul.f32 %v484, %v517
        %v610 = vmul.f32 %v485, %v516
        %v611 = vmul.f32 %v486, %v517
        %v612 = vmul.f32 %v487, %v516
        %v613 = vmul.f32 %v488, %v517
        %v614 = vmul.f32 %v489, %v516
        %v615 = vmul.f32 %v490, %v517
        %v616 = vmul.f32 %v491, %v516
        %v617 = vmul.f32 %v492, %v517
        %v618 = vmul.f32 %v493, %v516
        %v619 = vmul.f32 %v494, %v517
        %v620 = vmul.f32 %v495, %v516
        %v621 = vmul.f32 %v496, %v517
        %v622 = vmul.f32 %v497, %v516
        %v623 = vmul.f32 %v498, %v517
        %v624 = vld [vmem:[%s3 + $0x2] sm:$0x1]
        %v625 = vlaneseq
        %v626 = vshrl.u32 %v625, 7
        %v627 = vsub.s32 0, %v626
        %v628 = vrot.slane %v624, %v627
        %v629 = vmul.f32 %v608, %v628
        %v630 = vmul.f32 %v609, %v628
        %v631 = vmul.f32 %v610, %v628
        %v632 = vmul.f32 %v611, %v628
        %v633 = vmul.f32 %v612, %v628
        %v634 = vmul.f32 %v613, %v628
        %v635 = vmul.f32 %v614, %v628
        %v636 = vmul.f32 %v615, %v628
        %v637 = vmul.f32 %v616, %v628
        %v638 = vmul.f32 %v617, %v628
        %v639 = vmul.f32 %v618, %v628
        %v640 = vmul.f32 %v619, %v628
        %v641 = vmul.f32 %v620, %v628
        %v642 = vmul.f32 %v621, %v628
        %v643 = vmul.f32 %v622, %v628
        %v644 = vmul.f32 %v623, %v628
        %v645 = vadd.f32 %v592, %v629
        %v646 = vadd.f32 %v593, %v630
        %v647 = vadd.f32 %v594, %v631
        %v648 = vadd.f32 %v595, %v632
        %v649 = vadd.f32 %v596, %v633
        %v650 = vadd.f32 %v597, %v634
        %v651 = vadd.f32 %v598, %v635
        %v652 = vadd.f32 %v599, %v636
        %v653 = vadd.f32 %v600, %v637
        %v654 = vadd.f32 %v601, %v638
        %v655 = vadd.f32 %v602, %v639
        %v656 = vadd.f32 %v603, %v640
        %v657 = vadd.f32 %v604, %v641
        %v658 = vadd.f32 %v605, %v642
        %v659 = vadd.f32 %v606, %v643
        %v660 = vadd.f32 %v607, %v644
        %s661 = scalar_lea.vmem %s3, 4
        %v662 = vld [vmem:[%s661 + $0x1] sm:$0x1]
        %v663 = vlaneseq
        %v664 = vshrl.u32 %v663, 7
        %v665 = vsub.s32 0, %v664
        %v666 = vrot.slane %v662, %v665
        %v667 = vmul.f32 %v423, %v666
        %v668 = vmul.f32 %v424, %v666
        %v669 = vmul.f32 %v425, %v666
        %v670 = vmul.f32 %v426, %v666
        %v671 = vmul.f32 %v427, %v666
        %v672 = vmul.f32 %v428, %v666
        %v673 = vmul.f32 %v429, %v666
        %v674 = vmul.f32 %v430, %v666
        %v675 = vmul.f32 %v431, %v666
        %v676 = vmul.f32 %v432, %v666
        %v677 = vmul.f32 %v433, %v666
        %v678 = vmul.f32 %v434, %v666
        %v679 = vmul.f32 %v435, %v666
        %v680 = vmul.f32 %v436, %v666
        %v681 = vmul.f32 %v437, %v666
        %v682 = vmul.f32 %v438, %v666
        %v683 = vadd.f32 %v645, %v667
        %v684 = vadd.f32 %v646, %v668
        %v685 = vadd.f32 %v647, %v669
        %v686 = vadd.f32 %v648, %v670
        %v687 = vadd.f32 %v649, %v671
        %v688 = vadd.f32 %v650, %v672
        %v689 = vadd.f32 %v651, %v673
        %v690 = vadd.f32 %v652, %v674
        %v691 = vadd.f32 %v653, %v675
        %v692 = vadd.f32 %v654, %v676
        %v693 = vadd.f32 %v655, %v677
        %v694 = vadd.f32 %v656, %v678
        %v695 = vadd.f32 %v657, %v679
        %v696 = vadd.f32 %v658, %v680
        %v697 = vadd.f32 %v659, %v681
        %v698 = vadd.f32 %v660, %v682
        %v699 = vmul.f32 %v479, %v510
        %v700 = vmul.f32 %v480, %v511
        %v701 = vld [vmem:[%s661] sm:$0x1]
        %v702 = vlaneseq
        %v703 = vshrl.u32 %v702, 7
        %v704 = vsub.s32 0, %v703
        %v705 = vrot.slane %v701, %v704
        %v706 = vmul.f32 %v557, %v705
        %v707 = vmul.f32 %v558, %v705
        %v708 = vmul.f32 %v559, %v705
        %v709 = vmul.f32 %v560, %v705
        %v710 = vmul.f32 %v561, %v705
        %v711 = vmul.f32 %v562, %v705
        %v712 = vmul.f32 %v563, %v705
        %v713 = vmul.f32 %v564, %v705
        %v714 = vmul.f32 %v565, %v705
        %v715 = vmul.f32 %v566, %v705
        %v716 = vmul.f32 %v567, %v705
        %v717 = vmul.f32 %v568, %v705
        %v718 = vmul.f32 %v569, %v705
        %v719 = vmul.f32 %v570, %v705
        %v720 = vmul.f32 %v699, %v705
        %v721 = vmul.f32 %v700, %v705
        %v722 = vadd.f32 %v683, %v706
        %v723 = vadd.f32 %v684, %v707
        %v724 = vadd.f32 %v685, %v708
        %v725 = vadd.f32 %v686, %v709
        %v726 = vadd.f32 %v687, %v710
        %v727 = vadd.f32 %v688, %v711
        %v728 = vadd.f32 %v689, %v712
        %v729 = vadd.f32 %v690, %v713
        %v730 = vadd.f32 %v691, %v714
        %v731 = vadd.f32 %v692, %v715
        %v732 = vadd.f32 %v693, %v716
        %v733 = vadd.f32 %v694, %v717
        %v734 = vadd.f32 %v695, %v718
        %v735 = vadd.f32 %v696, %v719
        %v736 = vadd.f32 %v697, %v720
        %v737 = vadd.f32 %v698, %v721
        %v738 = vmul.f32 %v499, %v516
        %v739 = vmul.f32 %v500, %v517
        %v740 = vld [vmem:[%s661 + $0x2] sm:$0x1]
        %v741 = vlaneseq
        %v742 = vshrl.u32 %v741, 7
        %v743 = vsub.s32 0, %v742
        %v744 = vrot.slane %v740, %v743
        %v745 = vmul.f32 %v610, %v744
        %v746 = vmul.f32 %v611, %v744
        %v747 = vmul.f32 %v612, %v744
        %v748 = vmul.f32 %v613, %v744
        %v749 = vmul.f32 %v614, %v744
        %v750 = vmul.f32 %v615, %v744
        %v751 = vmul.f32 %v616, %v744
        %v752 = vmul.f32 %v617, %v744
        %v753 = vmul.f32 %v618, %v744
        %v754 = vmul.f32 %v619, %v744
        %v755 = vmul.f32 %v620, %v744
        %v756 = vmul.f32 %v621, %v744
        %v757 = vmul.f32 %v622, %v744
        %v758 = vmul.f32 %v623, %v744
        %v759 = vmul.f32 %v738, %v744
        %v760 = vmul.f32 %v739, %v744
        %v761 = vadd.f32 %v722, %v745
        %v762 = vadd.f32 %v723, %v746
        %v763 = vadd.f32 %v724, %v747
        %v764 = vadd.f32 %v725, %v748
        %v765 = vadd.f32 %v726, %v749
        %v766 = vadd.f32 %v727, %v750
        %v767 = vadd.f32 %v728, %v751
        %v768 = vadd.f32 %v729, %v752
        %v769 = vadd.f32 %v730, %v753
        %v770 = vadd.f32 %v731, %v754
        %v771 = vadd.f32 %v732, %v755
        %v772 = vadd.f32 %v733, %v756
        %v773 = vadd.f32 %v734, %v757
        %v774 = vadd.f32 %v735, %v758
        %v775 = vadd.f32 %v736, %v759
        %v776 = vadd.f32 %v737, %v760
        %s777 = scalar_lea.vmem %s3, 8
        %v778 = vld [vmem:[%s777 + $0x1] sm:$0x1]
        %v779 = vlaneseq
        %v780 = vshrl.u32 %v779, 7
        %v781 = vsub.s32 0, %v780
        %v782 = vrot.slane %v778, %v781
        %v783 = vmul.f32 %v425, %v782
        %v784 = vmul.f32 %v426, %v782
        %v785 = vmul.f32 %v427, %v782
        %v786 = vmul.f32 %v428, %v782
        %v787 = vmul.f32 %v429, %v782
        %v788 = vmul.f32 %v430, %v782
        %v789 = vmul.f32 %v431, %v782
        %v790 = vmul.f32 %v432, %v782
        %v791 = vmul.f32 %v433, %v782
        %v792 = vmul.f32 %v434, %v782
        %v793 = vmul.f32 %v435, %v782
        %v794 = vmul.f32 %v436, %v782
        %v795 = vmul.f32 %v437, %v782
        %v796 = vmul.f32 %v438, %v782
        %v797 = vmul.f32 %v421, %v782
        %v798 = vmul.f32 %v422, %v782
        %v799 = vadd.f32 %v761, %v783
        %v800 = vadd.f32 %v762, %v784
        %v801 = vadd.f32 %v763, %v785
        %v802 = vadd.f32 %v764, %v786
        %v803 = vadd.f32 %v765, %v787
        %v804 = vadd.f32 %v766, %v788
        %v805 = vadd.f32 %v767, %v789
        %v806 = vadd.f32 %v768, %v790
        %v807 = vadd.f32 %v769, %v791
        %v808 = vadd.f32 %v770, %v792
        %v809 = vadd.f32 %v771, %v793
        %v810 = vadd.f32 %v772, %v794
        %v811 = vadd.f32 %v773, %v795
        %v812 = vadd.f32 %v774, %v796
        %v813 = vadd.f32 %v775, %v797
        %v814 = vadd.f32 %v776, %v798
        %v815 = vmul.f32 %v481, %v510
        %v816 = vmul.f32 %v482, %v511
        %v817 = vld [vmem:[%s777] sm:$0x1]
        %v818 = vlaneseq
        %v819 = vshrl.u32 %v818, 7
        %v820 = vsub.s32 0, %v819
        %v821 = vrot.slane %v817, %v820
        %v822 = vmul.f32 %v559, %v821
        %v823 = vmul.f32 %v560, %v821
        %v824 = vmul.f32 %v561, %v821
        %v825 = vmul.f32 %v562, %v821
        %v826 = vmul.f32 %v563, %v821
        %v827 = vmul.f32 %v564, %v821
        %v828 = vmul.f32 %v565, %v821
        %v829 = vmul.f32 %v566, %v821
        %v830 = vmul.f32 %v567, %v821
        %v831 = vmul.f32 %v568, %v821
        %v832 = vmul.f32 %v569, %v821
        %v833 = vmul.f32 %v570, %v821
        %v834 = vmul.f32 %v699, %v821
        %v835 = vmul.f32 %v700, %v821
        %v836 = vmul.f32 %v815, %v821
        %v837 = vmul.f32 %v816, %v821
        %v838 = vadd.f32 %v799, %v822
        %v839 = vadd.f32 %v800, %v823
        %v840 = vadd.f32 %v801, %v824
        %v841 = vadd.f32 %v802, %v825
        %v842 = vadd.f32 %v803, %v826
        %v843 = vadd.f32 %v804, %v827
        %v844 = vadd.f32 %v805, %v828
        %v845 = vadd.f32 %v806, %v829
        %v846 = vadd.f32 %v807, %v830
        %v847 = vadd.f32 %v808, %v831
        %v848 = vadd.f32 %v809, %v832
        %v849 = vadd.f32 %v810, %v833
        %v850 = vadd.f32 %v811, %v834
        %v851 = vadd.f32 %v812, %v835
        %v852 = vadd.f32 %v813, %v836
        %v853 = vadd.f32 %v814, %v837
        %v854 = vmul.f32 %v501, %v516
        %v855 = vmul.f32 %v502, %v517
        %v856 = vld [vmem:[%s777 + $0x2] sm:$0x1]
        %v857 = vlaneseq
        %v858 = vshrl.u32 %v857, 7
        %v859 = vsub.s32 0, %v858
        %v860 = vrot.slane %v856, %v859
        %v861 = vmul.f32 %v612, %v860
        %v862 = vmul.f32 %v613, %v860
        %v863 = vmul.f32 %v614, %v860
        %v864 = vmul.f32 %v615, %v860
        %v865 = vmul.f32 %v616, %v860
        %v866 = vmul.f32 %v617, %v860
        %v867 = vmul.f32 %v618, %v860
        %v868 = vmul.f32 %v619, %v860
        %v869 = vmul.f32 %v620, %v860
        %v870 = vmul.f32 %v621, %v860
        %v871 = vmul.f32 %v622, %v860
        %v872 = vmul.f32 %v623, %v860
        %v873 = vmul.f32 %v738, %v860
        %v874 = vmul.f32 %v739, %v860
        %v875 = vmul.f32 %v854, %v860
        %v876 = vmul.f32 %v855, %v860
        %v877 = vadd.f32 %v838, %v861
        %v878 = vadd.f32 %v839, %v862
        %v879 = vadd.f32 %v840, %v863
        %v880 = vadd.f32 %v841, %v864
        %v881 = vadd.f32 %v842, %v865
        %v882 = vadd.f32 %v843, %v866
        %v883 = vadd.f32 %v844, %v867
        %v884 = vadd.f32 %v845, %v868
        %v885 = vadd.f32 %v846, %v869
        %v886 = vadd.f32 %v847, %v870
        %v887 = vadd.f32 %v848, %v871
        %v888 = vadd.f32 %v849, %v872
        %v889 = vadd.f32 %v850, %v873
        %v890 = vadd.f32 %v851, %v874
        %v891 = vadd.f32 %v852, %v875
        %v892 = vadd.f32 %v853, %v876
        %v893 = vld [vmem:[%s4] sm:$0xff]
        %v894 = vld [vmem:[%s5] sm:$0xff]
        %896 = vset.pattern.permute.xlu0 0
        %897 = vperm.xlu0 %896, %v894
        %v898 = vpop.permute.xlu0 %897
        %v901 = vsel %vm442, %v893, 0
        %v904 = vsel %vm442, %v877, 0
        %v907 = vsel %vm442, %v878, 0
        %v910 = vsel %vm442, %v879, 0
        %v913 = vsel %vm442, %v880, 0
        %v916 = vsel %vm442, %v881, 0
        %v919 = vsel %vm442, %v882, 0
        %v922 = vsel %vm442, %v883, 0
        %v925 = vsel %vm442, %v884, 0
        %v928 = vsel %vm442, %v885, 0
        %v931 = vsel %vm442, %v886, 0
        %v934 = vsel %vm442, %v887, 0
        %v937 = vsel %vm442, %v888, 0
        %v940 = vsel %vm442, %v889, 0
        %v943 = vsel %vm442, %v890, 0
        %v946 = vsel %vm442, %v891, 0
        %v949 = vsel %vm442, %v892, 0
        %951 = vmatprep.subr.mxu0 0.0
        %952 = vmatpush1.xpose.msra.mxu0 %v949
        %953 = vmatprep.subr.mxu0 0.0
        %954 = vmatpush1.xpose.msra.mxu0 %v946
        %955 = vmatprep.subr.mxu0 0.0
        %956 = vmatpush1.xpose.msra.mxu0 %v943
        %957 = vmatprep.subr.mxu0 0.0
        %958 = vmatpush1.xpose.msra.mxu0 %v940
        %959 = vmatprep.subr.mxu0 0.0
        %960 = vmatpush1.xpose.msra.mxu0 %v937
        %961 = vmatprep.subr.mxu0 0.0
        %962 = vmatpush1.xpose.msra.mxu0 %v934
        %963 = vmatprep.subr.mxu0 0.0
        %964 = vmatpush1.xpose.msra.mxu0 %v931
        %965 = vmatprep.subr.mxu0 0.0
        %966 = vmatpush1.xpose.msra.mxu0 %v928
        %967 = vmatprep.subr.mxu0 0.0
        %968 = vmatpush1.xpose.msra.mxu0 %v925
        %969 = vmatprep.subr.mxu0 0.0
        %970 = vmatpush1.xpose.msra.mxu0 %v922
        %971 = vmatprep.subr.mxu0 0.0
        %972 = vmatpush1.xpose.msra.mxu0 %v919
        %973 = vmatprep.subr.mxu0 0.0
        %974 = vmatpush1.xpose.msra.mxu0 %v916
        %975 = vmatprep.subr.mxu0 0.0
        %976 = vmatpush1.xpose.msra.mxu0 %v913
        %977 = vmatprep.subr.mxu0 0.0
        %978 = vmatpush1.xpose.msra.mxu0 %v910
        %979 = vmatprep.subr.mxu0 0.0
        %980 = vmatpush1.xpose.msra.mxu0 %v907
        %981 = vmatprep.subr.mxu0 0.0
        %982 = vmatpush1.xpose.msra.mxu0 %v904
        %983 = vmatprep.subr.mxu0 0.0
        %984 = vmatpush2.xpose.msra.mxu0 0.0
        %985 = vmatprep.subr.mxu0 0.0
        %986 = vmatpush2.xpose.msra.mxu0 0.0
        %987 = vmatprep.subr.mxu0 0.0
        %988 = vmatpush2.xpose.msra.mxu0 0.0
        %989 = vmatprep.subr.mxu0 0.0
        %990 = vmatpush2.xpose.msra.mxu0 0.0
        %991 = vmatprep.subr.mxu0 0.0
        %992 = vmatpush2.xpose.msra.mxu0 0.0
        %993 = vmatprep.subr.mxu0 0.0
        %994 = vmatpush2.xpose.msra.mxu0 0.0
        %995 = vmatprep.subr.mxu0 0.0
        %996 = vmatpush2.xpose.msra.mxu0 0.0
        %997 = vmatprep.subr.mxu0 0.0
        %998 = vmatpush2.xpose.msra.mxu0 0.0
        %999 = vmatprep.subr.mxu0 0.0
        %1000 = vmatpush2.xpose.msra.mxu0 0.0
        %1001 = vmatprep.subr.mxu0 0.0
        %1002 = vmatpush2.xpose.msra.mxu0 0.0
        %1003 = vmatprep.subr.mxu0 0.0
        %1004 = vmatpush2.xpose.msra.mxu0 0.0
        %1005 = vmatprep.subr.mxu0 0.0
        %1006 = vmatpush2.xpose.msra.mxu0 0.0
        %1007 = vmatprep.subr.mxu0 0.0
        %1008 = vmatpush2.xpose.msra.mxu0 0.0
        %1009 = vmatprep.subr.mxu0 0.0
        %1010 = vmatpush2.xpose.msra.mxu0 0.0
        %1011 = vmatprep.subr.mxu0 0.0
        %1012 = vmatpush2.xpose.msra.mxu0 0.0
        %1013 = vmatprep.subr.mxu0 0.0
        %1014 = vmatpush2.xpose.msra.mxu0 0.0
        %1015 = vmatprep.mubr.f32.mxu0 0.0
        %1016 = vmatmul.mubr.f32.gmra.mxu0 %v901
        %v1017 = vpop.f32.mrf.mxu0
        %v1018 = vadd.f32 %v898, %v1017
        %v1019 = vpop.f32.mrf.mxu0
        %1020 = vdwg.mxu0
        %v1021 = vmax.f32 %v1018, 0.0
        %1022 = vst [vmem:[%s361] sm:$0xff] %v1021
        %s1023 = sand.u32 %s205, 1
        %s1024 = scalar_lea.sflag [#allocation4], %s1023
        %s1025 = sand.u32 %s205, 1
        %s1026 = smul.addr %s1025, 8
        %s1027 = scalar_lea.vmem [#allocation3], %s1026
        // Predicated region
        $region45: #{tpu_custom_call.1} parent=43 // pred_check
          %p1028 = pneg %p215
        $region46: #{tpu_custom_call.1} parent=43 // pred_check_branch
          %1030 = sbr.rel (%p1028) target = $region48
        $region47: #{tpu_custom_call.1} parent=43 // pred_region
          %s1032 = ssub.s32 128, 128
          %1033 = vsyncadd %s1024, %s1032
          %s1034 = smul.addr %s24, 2
          %s1035 = sadd.s32 %s25, %s1034
          %s1036 = smul.addr %s1035, 128
          %s1037 = scalar_lea.hbm %s6, %s1036
          %s1039 = sshll.u32 %s1027, 4
          %s1040 = int_to_ptr.vmem [resolvable:$true] %s1039
          %1042 = dma.vmem_to_hbm [thread:$0]  %s1040, 128, %s1037, %s1024
        $region48: #{tpu_custom_call.1} parent=43 // pred_fallthru
          _
      $region44: #{tpu_custom_call.1} parent=5 // pred_fallthru
        _
      %p1043 = scmp.le.s32.totalorder 2, %s15
      // Predicated region
      $region49: #{tpu_custom_call.1} parent=5 // pred_check
        %p1044 = pneg %p1043
      $region50: #{tpu_custom_call.1} parent=5 // pred_check_branch
        %1046 = sbr.rel (%p1044) target = $region52
      $region51: #{tpu_custom_call.1} parent=5 // pred_region
        %s1047 = ssub.s32 %s15, 2
        // Predicated region
        $region53: #{tpu_custom_call.1} parent=51 // pred_check
          %p1048 = pneg %p221
        $region54: #{tpu_custom_call.1} parent=51 // pred_check_branch
          %1050 = sbr.rel (%p1048) target = $region56
        $region55: #{tpu_custom_call.1} parent=51 // pred_region
          %s1051 = sand.u32 %s206, 1
          %s1052 = scalar_lea.sflag [#allocation4], %s1051
          %s1053 = sand.u32 %s206, 1
          %s1054 = smul.addr %s1053, 8
          %s1055 = scalar_lea.vmem [#allocation3], %s1054
          %1056 = dma.done %s1052, 128
        $region56: #{tpu_custom_call.1} parent=51 // pred_fallthru
          _
      $region52: #{tpu_custom_call.1} parent=5 // pred_fallthru
        _
    $region6: #{tpu_custom_call.1} parent=1 // loop_footer
      %s19 = sadd.s32 1, %s15
    $region7: #{tpu_custom_call.1} parent=1 // loop_footer_branch
      %14 = sbr.rel target = $region3
    $region8: #{tpu_custom_call.1} parent=1 // loop_exit
      _
    %1057 = vsyncpa [#allocation4], 1
    %s1058 = scalar_lea.sflag [#allocation4], 1
    %1059 = vsyncpa %s1058, 1

</llo_original>
